<compile_context>
chip_gen: v7x
topology: tpu7x:2x2x1
jax: 0.10.0
libtpu: 0.0.40
codegen_flags: <defaults>
</compile_context>

<pallas_src>
import functools

import jax
import jax.numpy as jnp
from jax.experimental import pallas as pl
from jax.experimental.pallas import tpu as pltpu


def _layernorm_kernel(x_ref, g_ref, b_ref, o_ref, *, eps: float):
    x = x_ref[...].astype(jnp.float32)                      # (tm, D)
    d = x.shape[-1]
    mean = jnp.mean(x, axis=-1, keepdims=True)              # (tm, 1)
    xc = x - mean
    # PyTorch Tensor.std() defaults to unbiased (divide by D - 1).
    var = jnp.sum(xc * xc, axis=-1, keepdims=True) / (d - 1)
    std = jnp.sqrt(var)
    inv = 1.0 / (std + eps)                                 # eps added to std (matches spec)
    y = g_ref[...].astype(jnp.float32) * (xc * inv) + b_ref[...].astype(jnp.float32)
    o_ref[...] = y.astype(o_ref.dtype)


def _round_up(n, m):
    return ((n + m - 1) // m) * m


def layer_norm(x, gamma, beta, *, eps=1e-6, tm=256):
    """x: (..., D); gamma, beta: (D,).  Normalizes over the last axis."""
    orig_shape = x.shape
    D = orig_shape[-1]
    x2d = x.reshape(-1, D)
    M = x2d.shape[0]

    # Row tile: as large as possible (big tiles are the main perf lever),
    # multiple of 8 (sublane granularity), capped by the padded row count.
    tm_eff = min(tm, _round_up(M, 8))
    M_pad = _round_up(M, tm_eff)
    if M_pad != M:
        # Zero padding is numerically safe: std=0, divide by eps -> finite.
        x2d = jnp.pad(x2d, ((0, M_pad - M), (0, 0)))

    g2d = gamma.reshape(1, D)
    b2d = beta.reshape(1, D)

    x_bytes = jnp.dtype(x.dtype).itemsize
    p_bytes = jnp.dtype(gamma.dtype).itemsize
    cost = pl.CostEstimate(
        flops=9 * M * D,                 # sub, 2x reduce, mul, div, scale, shift, ...
        transcendentals=M,               # one sqrt per row
        bytes_accessed=2 * M * D * x_bytes + 2 * D * p_bytes,
    )

    out = pl.pallas_call(
        functools.partial(_layernorm_kernel, eps=eps),
        out_shape=jax.ShapeDtypeStruct((M_pad, D), x.dtype),
        grid_spec=pltpu.PrefetchScalarGridSpec(
            num_scalar_prefetch=0,
            grid=(M_pad // tm_eff,),
            in_specs=[
                pl.BlockSpec((tm_eff, D), lambda i: (i, 0)),   # x row-tile
                pl.BlockSpec((1, D), lambda i: (0, 0)),        # gamma (constant block)
                pl.BlockSpec((1, D), lambda i: (0, 0)),        # beta  (constant block)
            ],
            out_specs=pl.BlockSpec((tm_eff, D), lambda i: (i, 0)),
        ),
        compiler_params=pltpu.CompilerParams(
            dimension_semantics=("parallel",)),
        cost_estimate=cost,
    )(x2d, g2d, b2d)

    if M_pad != M:
        out = out[:M]
    return out.reshape(orig_shape)


def _reference(x, gamma, beta, eps=1e-6):
    mean = jnp.mean(x, axis=-1, keepdims=True)
    xc = x - mean
    var = jnp.sum(xc * xc, axis=-1, keepdims=True) / (x.shape[-1] - 1)  # unbiased
    std = jnp.sqrt(var)
    return gamma * xc / (std + eps) + beta


if __name__ == "__main__":
    key = jax.random.PRNGKey(0)
    kx, kg, kb, kx2 = jax.random.split(key, 4)

    # Small shapes consistent with a Transformer LayerNorm; features=128 keeps
    # the lane dimension dense.
    batch, seq, features = 2, 8, 128
    x = jax.random.normal(kx, (batch, seq, features), dtype=jnp.float32)
    gamma = 1.0 + 0.1 * jax.random.normal(kg, (features,), dtype=jnp.float32)
    beta = 0.1 * jax.random.normal(kb, (features,), dtype=jnp.float32)

    out = layer_norm(x, gamma, beta, eps=1e-6)
    out = jax.block_until_ready(out)
    ref = _reference(x, gamma, beta, eps=1e-6)
    assert out.shape == x.shape
    assert jnp.allclose(out, ref, atol=1e-5, rtol=1e-5), "mismatch vs reference"

    # Ragged row count (batch*seq not a multiple of the tile) exercises padding.
    x2 = jax.random.normal(kx2, (3, 5, features), dtype=jnp.float32)
    out2 = jax.block_until_ready(layer_norm(x2, gamma, beta, eps=1e-6))
    ref2 = _reference(x2, gamma, beta, eps=1e-6)
    assert out2.shape == x2.shape
    assert jnp.allclose(out2, ref2, atol=1e-5, rtol=1e-5), "ragged-M mismatch vs reference"

    print("KERNEL_OK")
</pallas_src>

<mosaic_0001>
module attributes {stable_mosaic.version = 11 : i64} {
  func.func @_layernorm_kernel(%arg0: i32, %arg1: memref<16x128xf32, #tpu.memory_space<vmem>>, %arg2: memref<1x128xf32, #tpu.memory_space<vmem>>, %arg3: memref<1x128xf32, #tpu.memory_space<vmem>>, %arg4: memref<16x128xf32, #tpu.memory_space<vmem>>) attributes {dimension_semantics = [#tpu.dimension_semantics<parallel>], iteration_bounds = array<i64: 1>, scalar_prefetch = 0 : i64, scratch_operands = 0 : i64, tpu.core_type = #tpu.core_type<tc>, window_params = [{transform_indices = @transform_0, window_bounds = array<i64: 16, 128>}, {pipeline_mode = #tpu.pipeline_mode<synchronous>, transform_indices = @transform_1, window_bounds = array<i64: 1, 128>}, {pipeline_mode = #tpu.pipeline_mode<synchronous>, transform_indices = @transform_2, window_bounds = array<i64: 1, 128>}, {transform_indices = @transform_3, window_bounds = array<i64: 16, 128>}]} {
    %c0 = arith.constant 0 : index
    %c0_0 = arith.constant 0 : index
    %0 = vector.load %arg1[%c0, %c0_0] : memref<16x128xf32, #tpu.memory_space<vmem>>, vector<16x128xf32>
    %cst = arith.constant dense<0.000000e+00> : vector<16xf32>
    %1 = vector.multi_reduction <add>, %0, %cst [1] : vector<16x128xf32> to vector<16xf32>
    %2 = vector.shape_cast %1 : vector<16xf32> to vector<16x1xf32>
    %cst_1 = arith.constant 1.280000e+02 : f32
    %3 = vector.broadcast %cst_1 : f32 to vector<16x1xf32>
    %4 = arith.divf %2, %3 : vector<16x1xf32>
    %5 = vector.broadcast %4 : vector<16x1xf32> to vector<16x128xf32>
    %6 = arith.subf %0, %5 : vector<16x128xf32>
    %7 = arith.mulf %6, %6 : vector<16x128xf32>
    %cst_2 = arith.constant dense<0.000000e+00> : vector<16xf32>
    %8 = vector.multi_reduction <add>, %7, %cst_2 [1] : vector<16x128xf32> to vector<16xf32>
    %9 = vector.shape_cast %8 : vector<16xf32> to vector<16x1xf32>
    %cst_3 = arith.constant 1.270000e+02 : f32
    %10 = vector.broadcast %cst_3 : f32 to vector<16x1xf32>
    %11 = arith.divf %9, %10 : vector<16x1xf32>
    %12 = math.sqrt %11 : vector<16x1xf32>
    %cst_4 = arith.constant 9.99999997E-7 : f32
    %13 = vector.broadcast %cst_4 : f32 to vector<16x1xf32>
    %14 = arith.addf %12, %13 : vector<16x1xf32>
    %cst_5 = arith.constant 1.000000e+00 : f32
    %15 = vector.broadcast %cst_5 : f32 to vector<16x1xf32>
    %16 = arith.divf %15, %14 : vector<16x1xf32>
    %c0_6 = arith.constant 0 : index
    %c0_7 = arith.constant 0 : index
    %17 = vector.load %arg2[%c0_6, %c0_7] : memref<1x128xf32, #tpu.memory_space<vmem>>, vector<1x128xf32>
    %18 = vector.broadcast %16 : vector<16x1xf32> to vector<16x128xf32>
    %19 = arith.mulf %6, %18 : vector<16x128xf32>
    %20 = vector.broadcast %17 : vector<1x128xf32> to vector<16x128xf32>
    %21 = arith.mulf %20, %19 : vector<16x128xf32>
    %c0_8 = arith.constant 0 : index
    %c0_9 = arith.constant 0 : index
    %22 = vector.load %arg3[%c0_8, %c0_9] : memref<1x128xf32, #tpu.memory_space<vmem>>, vector<1x128xf32>
    %23 = vector.broadcast %22 : vector<1x128xf32> to vector<16x128xf32>
    %24 = arith.addf %21, %23 : vector<16x128xf32>
    %c0_10 = arith.constant 0 : index
    %c0_11 = arith.constant 0 : index
    %25 = vector.load %arg4[%c0_10, %c0_11] : memref<16x128xf32, #tpu.memory_space<vmem>>, vector<16x128xf32>
    tpu.vector_store %arg4[%c0_10, %c0_11], %24 {strides = array<i32>} : memref<16x128xf32, #tpu.memory_space<vmem>>, vector<16x128xf32>,
    return
  }
  func.func @transform_0(%arg0: i32) -> (i32, i32) {
    %c0_i32 = arith.constant 0 : i32
    %c0_i32_0 = arith.constant 0 : i32
    return %arg0, %c0_i32 : i32, i32
  }
  func.func @transform_1(%arg0: i32) -> (i32, i32) {
    %c0_i32 = arith.constant 0 : i32
    %c0_i32_0 = arith.constant 0 : i32
    %c0_i32_1 = arith.constant 0 : i32
    return %c0_i32, %c0_i32_0 : i32, i32
  }
  func.func @transform_2(%arg0: i32) -> (i32, i32) {
    %c0_i32 = arith.constant 0 : i32
    %c0_i32_0 = arith.constant 0 : i32
    %c0_i32_1 = arith.constant 0 : i32
    return %c0_i32, %c0_i32_0 : i32, i32
  }
  func.func @transform_3(%arg0: i32) -> (i32, i32) {
    %c0_i32 = arith.constant 0 : i32
    %c0_i32_0 = arith.constant 0 : i32
    return %arg0, %c0_i32 : i32, i32
  }
}

</mosaic_0001>

<llo_original>
// kernel: tpu_custom_call.1
$region0: #{tpu_custom_call.1}
  #allocation0 [shape = 'u32[]', space=smem, size = 0x4, offset = 0x4, fixed_abs, tag = 'smem constant byte address 0x4 - core index']
  #allocation1 [shape = 'u32[144,128]{1,0:T(1,128)}', space=vmem, size = 0x12000, scoped, tag = 'internal scratch']
  %s0 = inlined_call_operand.hbm [shape: f32[16,128], index: 0, kind: input, shape index: {}]
  %s1 = inlined_call_operand.vmem [shape: f32[1,128], index: 1, kind: input, shape index: {}]
  %s2 = inlined_call_operand.vmem [shape: f32[1,128], index: 2, kind: input, shape index: {}]
  %s3 = inlined_call_operand.hbm [shape: f32[16,128], index: 3, kind: output, shape index: {}]
  %s4 = sld [smem:[#allocation0]]
  $region26: #{tpu_custom_call.1} parent=0
    _
  %s6 = ssub.s32 1, %s4
  %s7 = scalar_select 0, %s6, %s4
  $region1: #{tpu_custom_call.1} parent=0
    #allocation2 [shape = 'u8[8192]{0}', space=vmem, size = 0x2000, scoped, tag = 'input window, operand 0, single buffered']
    #allocation3 [shape = 's32[1]{0}', space=sflag, size = 0x4, scoped, tag = 'scoped memory for tpu_custom_call.1']
    #allocation4 [shape = 's32[1]{0}', space=sflag, size = 0x4, scoped, tag = 'scoped memory for tpu_custom_call.1']
    #allocation5 [shape = 'u8[8192]{0}', space=vmem, size = 0x2000, scoped, tag = 'output window, operand 0, single buffered']
    %8 = vsyncpa [#allocation3], 0
    %9 = vsyncpa [#allocation4], 0
    // Predicated region
    $region2: #{tpu_custom_call.1} parent=1 // pred_check
      _
    $region3: #{tpu_custom_call.1} parent=1 // pred_check_branch
      %11 = sbr.rel (0) target = $region5
    $region4: #{tpu_custom_call.1} parent=1 // pred_region
      %s13 = ssub.s32 256, 256
      %14 = vsyncadd [#allocation3], %s13
      %s15 = sshll.u32 [#allocation2], 4
      %s16 = int_to_ptr.vmem [resolvable:$true] %s15
      %21 = dma.hbm_to_vmem [thread:$0]  %s0, 256, %s16, [#allocation3], 128, 128, 8
    $region5: #{tpu_custom_call.1} parent=1 // pred_fallthru
      _
    // Predicated region
    $region6: #{tpu_custom_call.1} parent=1 // pred_check
      _
    $region7: #{tpu_custom_call.1} parent=1 // pred_check_branch
      %23 = sbr.rel (0) target = $region9
    $region8: #{tpu_custom_call.1} parent=1 // pred_region
      _
    $region9: #{tpu_custom_call.1} parent=1 // pred_fallthru
      _
    // Predicated region
    $region10: #{tpu_custom_call.1} parent=1 // pred_check
      _
    $region11: #{tpu_custom_call.1} parent=1 // pred_check_branch
      %25 = sbr.rel (0) target = $region13
    $region12: #{tpu_custom_call.1} parent=1 // pred_region
      _
    $region13: #{tpu_custom_call.1} parent=1 // pred_fallthru
      _
    // Predicated region
    $region14: #{tpu_custom_call.1} parent=1 // pred_check
      _
    $region15: #{tpu_custom_call.1} parent=1 // pred_check_branch
      %27 = sbr.rel (0) target = $region17
    $region16: #{tpu_custom_call.1} parent=1 // pred_region
      %28 = dma.done [#allocation3], 256
    $region17: #{tpu_custom_call.1} parent=1 // pred_fallthru
      _
    %v29 = vld [vmem:[#allocation2] sm:$0xff]
    %v30 = vld [vmem:[#allocation2 + $0x8] sm:$0xff]
    %31 = vadd.xlane.f32.xlu0 %v29
    %v32 = vpop.xlane.xlu0 %31
    %33 = vadd.xlane.f32.xlu0 %v30
    %v34 = vpop.xlane.xlu0 %33
    %v35 = vrcp.pop 128.0
    %v36 = vmul.f32 %v32, %v35
    %v37 = vmul.f32 %v34, %v35
    %v38 = vsub.f32 %v29, %v36
    %v39 = vsub.f32 %v30, %v37
    %v40 = vmul.f32 %v38, %v38
    %v41 = vmul.f32 %v39, %v39
    %42 = vadd.xlane.f32.xlu0 %v40
    %v43 = vpop.xlane.xlu0 %42
    %44 = vadd.xlane.f32.xlu0 %v41
    %v45 = vpop.xlane.xlu0 %44
    %v46 = vrcp.pop 127.0
    %v47 = vmul.f32 %v43, %v46
    %v48 = vmul.f32 %v45, %v46
    %v49 = vrsqrt.pop %v47
    %v50 = vmul.f32 %v47, %v49
    %vm51 = vcmp.eq.f32.partialorder %v47, inf
    %v52 = vsel %vm51, %v47, %v50
    %vm53 = vcmp.eq.f32.partialorder %v47, 0.0
    %v54 = vand.u32 %v47, 2147483648
    %v55 = vsel %vm53, %v54, %v52
    %v56 = vrsqrt.pop %v48
    %v57 = vmul.f32 %v48, %v56
    %vm58 = vcmp.eq.f32.partialorder %v48, inf
    %v59 = vsel %vm58, %v48, %v57
    %vm60 = vcmp.eq.f32.partialorder %v48, 0.0
    %v61 = vand.u32 %v48, 2147483648
    %v62 = vsel %vm60, %v61, %v59
    %v63 = vadd.f32 %v55, 1e-06
    %v64 = vadd.f32 %v62, 1e-06
    %v65 = vrcp.pop %v63
    %v66 = vmul.f32 1.0, %v65
    %v67 = vrcp.pop %v64
    %v68 = vmul.f32 1.0, %v67
    %v69 = vld [vmem:[%s1] sm:$0x1]
    %v70 = vmul.f32 %v38, %v66
    %v71 = vmul.f32 %v39, %v68
    %v73 = vlaneseq
    %v74 = vshrl.u32 %v73, 7
    %v75 = vsub.s32 0, %v74
    %v76 = vrot.slane %v69, %v75
    %v78 = vmul.f32 %v76, %v70
    %v79 = vmul.f32 %v76, %v71
    %v80 = vld [vmem:[%s2] sm:$0x1]
    %v82 = vlaneseq
    %v83 = vshrl.u32 %v82, 7
    %v84 = vsub.s32 0, %v83
    %v85 = vrot.slane %v80, %v84
    %v87 = vadd.f32 %v78, %v85
    %v88 = vadd.f32 %v79, %v85
    %89 = vst [vmem:[#allocation5] sm:$0xff] %v87
    %90 = vst [vmem:[#allocation5 + $0x8] sm:$0xff] %v88
    // Predicated region
    $region18: #{tpu_custom_call.1} parent=1 // pred_check
      _
    $region19: #{tpu_custom_call.1} parent=1 // pred_check_branch
      %92 = sbr.rel (0) target = $region21
    $region20: #{tpu_custom_call.1} parent=1 // pred_region
      %s94 = ssub.s32 256, 256
      %95 = vsyncadd [#allocation4], %s94
      %s96 = sshll.u32 [#allocation5], 4
      %s97 = int_to_ptr.vmem [resolvable:$true] %s96
      %102 = dma.vmem_to_hbm [thread:$0]  %s97, 256, %s3, [#allocation4], 128, 128, 8
    $region21: #{tpu_custom_call.1} parent=1 // pred_fallthru
      _
    // Predicated region
    $region22: #{tpu_custom_call.1} parent=1 // pred_check
      _
    $region23: #{tpu_custom_call.1} parent=1 // pred_check_branch
      %104 = sbr.rel (0) target = $region25
    $region24: #{tpu_custom_call.1} parent=1 // pred_region
      %105 = dma.done [#allocation4], 256
    $region25: #{tpu_custom_call.1} parent=1 // pred_fallthru
      _
    %106 = vsyncpa [#allocation3], 1
    %107 = vsyncpa [#allocation4], 1

</llo_original>
